<compile_context>
chip_gen: v5e
topology: v5e:2x2
jax: 0.10.0
libtpu: 0.0.40
codegen_flags: <defaults>
</compile_context>

<pallas_src>
import jax
import jax.numpy as jnp
from jax.experimental import pallas as pl
from jax.experimental.pallas import tpu as pltpu


def _round_up(x, m):
    return ((x + m - 1) // m) * m


def _cbr_kernel(p_ref, w_ref, shift_ref, o_ref):
    # conv-as-matmul on the MXU: bf16 operands, f32 accumulation
    acc = jnp.dot(p_ref[...], w_ref[...], preferred_element_type=jnp.float32)
    # folded conv-bias + eval-mode BN shift, then ReLU (epilogue kept in f32)
    o_ref[...] = jnp.maximum(acc + shift_ref[...], 0.0).astype(o_ref.dtype)


def _pick_tile_and_vmem(M, kkc_pad, cout_pad, tile_m):
    """Pick an M-tile that is a multiple of 8 and fits comfortably in VMEM."""
    tm = min(tile_m, _round_up(M, 8))
    tm = _round_up(tm, 8)

    def working_set(t):
        return (2 * t * kkc_pad * 2          # bf16 patches tile, double-buffered
                + 2 * kkc_pad * cout_pad * 2  # bf16 weights block, double-buffered
                + 2 * t * cout_pad * 4        # f32 output tile, double-buffered
                + 2 * 8 * cout_pad * 4)       # shift row (padded layout)

    # Leave headroom under v7x's 64 MiB physical VMEM per TensorCore.
    hard_limit = 48 * 1024 * 1024
    while tm > 8 and working_set(tm) > hard_limit:
        tm = max(8, (tm // 2) // 8 * 8)

    vmem_limit = int(min(hard_limit, max(2 * working_set(tm), 16 * 1024 * 1024)))
    return tm, vmem_limit


def cbr_forward(x_nchw, weight, bias, gamma, beta, running_mean, running_var,
                *, kernel_size=3, stride=2, padding=1, eps=1e-5, tile_m=512):
    N, C_in, H, W = x_nchw.shape
    C_out = weight.shape[0]
    K = kernel_size

    # ---- glue: NCHW -> NHWC, pad, im2col -------------------------------------
    x = jnp.transpose(x_nchw, (0, 2, 3, 1))
    xp = jnp.pad(x, ((0, 0), (padding, padding), (padding, padding), (0, 0)))
    Ho = (H + 2 * padding - K) // stride + 1
    Wo = (W + 2 * padding - K) // stride + 1
    cols = []
    for kh in range(K):
        for kw in range(K):
            cols.append(xp[:, kh:kh + stride * Ho:stride,
                           kw:kw + stride * Wo:stride, :])
    M = N * Ho * Wo
    KKC = K * K * C_in
    patches = jnp.concatenate(cols, axis=-1).reshape(M, KKC)

    # ---- fold BN (eval mode, running stats) + conv bias ----------------------
    inv_std = 1.0 / jnp.sqrt(running_var.astype(jnp.float32) + eps)
    scale = gamma.astype(jnp.float32) * inv_std                       # (C_out,)
    shift = ((bias.astype(jnp.float32) - running_mean.astype(jnp.float32))
             * scale + beta.astype(jnp.float32))                      # (C_out,)

    # weight (C_out, C_in, K, K) -> (K*K*C_in, C_out), matching (kh, kw, c_in),
    # with the BN scale folded into the output-channel columns.
    w_mat = jnp.transpose(weight, (2, 3, 1, 0)).reshape(KKC, C_out)
    w_mat = w_mat.astype(jnp.float32) * scale[None, :]

    # ---- pad to lane-dense / MXU-friendly shapes -----------------------------
    kkc_pad = _round_up(KKC, 128)
    cout_pad = _round_up(C_out, 128)
    tm, vmem_limit = _pick_tile_and_vmem(M, kkc_pad, cout_pad, tile_m)
    m_pad = _round_up(M, tm)

    patches_p = jnp.pad(patches, ((0, m_pad - M), (0, kkc_pad - KKC)))
    patches_p = patches_p.astype(jnp.bfloat16)
    w_p = jnp.pad(w_mat, ((0, kkc_pad - KKC), (0, cout_pad - C_out)))
    w_p = w_p.astype(jnp.bfloat16)
    shift_p = jnp.pad(shift, (0, cout_pad - C_out)).reshape(1, cout_pad)
    shift_p = shift_p.astype(jnp.float32)

    out_dtype = x_nchw.dtype

    out_flat = pl.pallas_call(
        _cbr_kernel,
        out_shape=jax.ShapeDtypeStruct((m_pad, cout_pad), out_dtype),
        grid_spec=pltpu.PrefetchScalarGridSpec(
            num_scalar_prefetch=0,
            grid=(m_pad // tm,),
            in_specs=[
                pl.BlockSpec((tm, kkc_pad), lambda i: (i, 0)),
                pl.BlockSpec((kkc_pad, cout_pad), lambda i: (0, 0)),
                pl.BlockSpec((1, cout_pad), lambda i: (0, 0)),
            ],
            out_specs=pl.BlockSpec((tm, cout_pad), lambda i: (i, 0)),
        ),
        compiler_params=pltpu.CompilerParams(
            dimension_semantics=("parallel",),
            vmem_limit_bytes=vmem_limit,
            # let XLA fuse the im2col slicing into the pallas call for the
            # patches operand (weights / shift are tiny, keep them plain)
            allow_input_fusion=[True, False, False],
        ),
    )(patches_p, w_p, shift_p)

    # ---- glue: strip padding, back to NCHW -----------------------------------
    out = out_flat[:M, :C_out].reshape(N, Ho, Wo, C_out)
    return jnp.transpose(out, (0, 3, 1, 2))


def _reference(x_nchw, weight, bias, gamma, beta, running_mean, running_var,
               *, stride=2, padding=1, eps=1e-5):
    y = jax.lax.conv_general_dilated(
        x_nchw, weight, window_strides=(stride, stride),
        padding=((padding, padding), (padding, padding)),
        dimension_numbers=("NCHW", "OIHW", "NCHW"))
    y = y + bias.reshape(1, -1, 1, 1)
    y = (y - running_mean.reshape(1, -1, 1, 1)) * \
        (gamma / jnp.sqrt(running_var + eps)).reshape(1, -1, 1, 1) + \
        beta.reshape(1, -1, 1, 1)
    return jnp.maximum(y, 0.0)


if __name__ == "__main__":
    # small shapes consistent with the module: CBR(in_channel=4, out_channel=8)
    N, C_in, H, W = 2, 4, 16, 16
    C_out, K = 8, 3

    key = jax.random.PRNGKey(0)
    kx, kw, kb, kg, kbt = jax.random.split(key, 5)

    x = jax.random.normal(kx, (N, C_in, H, W), dtype=jnp.float32)
    weight = jax.random.normal(kw, (C_out, C_in, K, K), dtype=jnp.float32) * 0.1
    bias = jax.random.normal(kb, (C_out,), dtype=jnp.float32) * 0.1
    gamma = 1.0 + 0.1 * jax.random.normal(kg, (C_out,), dtype=jnp.float32)
    beta = 0.1 * jax.random.normal(kbt, (C_out,), dtype=jnp.float32)
    running_mean = 0.05 * jnp.arange(C_out, dtype=jnp.float32)
    running_var = 1.0 + 0.1 * jnp.arange(C_out, dtype=jnp.float32)

    cbr_jit = jax.jit(cbr_forward)
    out = cbr_jit(x, weight, bias, gamma, beta, running_mean, running_var)
    out = jax.block_until_ready(out)

    ref = _reference(x, weight, bias, gamma, beta, running_mean, running_var)
    assert out.shape == (N, C_out, H // 2, W // 2), out.shape
    # bf16 operands (f32 accumulate) -> allow bf16-level quantization error
    assert jnp.allclose(out, ref, atol=5e-2, rtol=5e-2), \
        float(jnp.max(jnp.abs(out - ref)))

    print("KERNEL_OK")
</pallas_src>

<mosaic_0001>
module attributes {stable_mosaic.version = 11 : i64} {
  func.func @_cbr_kernel(%arg0: i32, %arg1: memref<128x128xbf16, #tpu.memory_space<vmem>>, %arg2: memref<128x128xbf16, #tpu.memory_space<vmem>>, %arg3: memref<1x128xf32, #tpu.memory_space<vmem>>, %arg4: memref<128x128xf32, #tpu.memory_space<vmem>>) attributes {dimension_semantics = [#tpu.dimension_semantics<parallel>], iteration_bounds = array<i64: 1>, scalar_prefetch = 0 : i64, scratch_operands = 0 : i64, tpu.core_type = #tpu.core_type<tc>, window_params = [{transform_indices = @transform_0, window_bounds = array<i64: 128, 128>}, {pipeline_mode = #tpu.pipeline_mode<synchronous>, transform_indices = @transform_1, window_bounds = array<i64: 128, 128>}, {pipeline_mode = #tpu.pipeline_mode<synchronous>, transform_indices = @transform_2, window_bounds = array<i64: 1, 128>}, {transform_indices = @transform_3, window_bounds = array<i64: 128, 128>}]} {
    %c0 = arith.constant 0 : index
    %c0_0 = arith.constant 0 : index
    %0 = vector.load %arg1[%c0, %c0_0] : memref<128x128xbf16, #tpu.memory_space<vmem>>, vector<128x128xbf16>
    %c0_1 = arith.constant 0 : index
    %c0_2 = arith.constant 0 : index
    %1 = vector.load %arg2[%c0_1, %c0_2] : memref<128x128xbf16, #tpu.memory_space<vmem>>, vector<128x128xbf16>
    %cst = arith.constant dense<0.000000e+00> : vector<128x128xf32>
    %2 = tpu.matmul %0, %1, %cst {dimension_numbers = #tpu.dot_dimension_numbers<[1], [0], [0], [1], [0, 0, 1, 1], [], []>} : vector<128x128xbf16>, vector<128x128xbf16>, vector<128x128xf32> -> vector<128x128xf32>
    %c0_3 = arith.constant 0 : index
    %c0_4 = arith.constant 0 : index
    %3 = vector.load %arg3[%c0_3, %c0_4] : memref<1x128xf32, #tpu.memory_space<vmem>>, vector<1x128xf32>
    %4 = vector.broadcast %3 : vector<1x128xf32> to vector<128x128xf32>
    %5 = arith.addf %2, %4 : vector<128x128xf32>
    %cst_5 = arith.constant 0.000000e+00 : f32
    %6 = vector.broadcast %cst_5 : f32 to vector<128x128xf32>
    %7 = arith.maximumf %5, %6 : vector<128x128xf32>
    %c0_6 = arith.constant 0 : index
    %c0_7 = arith.constant 0 : index
    %8 = vector.load %arg4[%c0_6, %c0_7] : memref<128x128xf32, #tpu.memory_space<vmem>>, vector<128x128xf32>
    tpu.vector_store %arg4[%c0_6, %c0_7], %7 {strides = array<i32>} : memref<128x128xf32, #tpu.memory_space<vmem>>, vector<128x128xf32>,
    return
  }
  func.func @transform_0(%arg0: i32) -> (i32, i32) {
    %c0_i32 = arith.constant 0 : i32
    %c0_i32_0 = arith.constant 0 : i32
    return %arg0, %c0_i32 : i32, i32
  }
  func.func @transform_1(%arg0: i32) -> (i32, i32) {
    %c0_i32 = arith.constant 0 : i32
    %c0_i32_0 = arith.constant 0 : i32
    %c0_i32_1 = arith.constant 0 : i32
    return %c0_i32, %c0_i32_0 : i32, i32
  }
  func.func @transform_2(%arg0: i32) -> (i32, i32) {
    %c0_i32 = arith.constant 0 : i32
    %c0_i32_0 = arith.constant 0 : i32
    %c0_i32_1 = arith.constant 0 : i32
    return %c0_i32, %c0_i32_0 : i32, i32
  }
  func.func @transform_3(%arg0: i32) -> (i32, i32) {
    %c0_i32 = arith.constant 0 : i32
    %c0_i32_0 = arith.constant 0 : i32
    return %arg0, %c0_i32 : i32, i32
  }
}

</mosaic_0001>

<llo_original>
// kernel: cbr_forward.2
$region0: #{cbr_forward.2}
  #allocation0 [shape = 'u32[]', space=smem, size = 0x4, offset = 0x4, fixed_abs, tag = 'smem constant byte address 0x4 - core index']
  #allocation1 [shape = 'u32[72,128]{1,0:T(1,128)}', space=vmem, size = 0x9000, scoped, tag = 'internal scratch']
  #allocation2 [shape = 'u32[2048]{0}', space=vmem, size = 0x2000, scoped, tag = 'scoped memory for cbr_forward.2']
  #allocation3 [shape = 'u32[2048]{0}', space=vmem, size = 0x2000, scoped, tag = 'scoped memory for cbr_forward.2']
  #allocation4 [shape = 'u32[2048]{0}', space=vmem, size = 0x2000, scoped, tag = 'scoped memory for cbr_forward.2']
  #allocation5 [shape = 'u32[2048]{0}', space=vmem, size = 0x2000, scoped, tag = 'scoped memory for cbr_forward.2']
  #allocation6 [shape = 'u32[2048]{0}', space=vmem, size = 0x2000, scoped, tag = 'scoped memory for cbr_forward.2']
  %s0 = inlined_call_operand.vmem [shape: bf16[128,128], index: 0, kind: input, shape index: {}]
  %s1 = inlined_call_operand.vmem [shape: f32[1,128], index: 1, kind: input, shape index: {}]
  %s2 = inlined_call_operand.vmem [shape: bf16[128,36], index: 2, kind: input, shape index: {}]
  %s3 = inlined_call_operand.<no memory space> [shape: bf16[], index: 3, kind: input, shape index: {}]
  %s4 = inlined_call_operand.vmem [shape: f32[128,128], index: 4, kind: output, shape index: {}]
  %s5 = sld [smem:[#allocation0]]
  $region22: #{cbr_forward.2} parent=0
    _
  %s7 = ssub.s32 1, %s5
  %s8 = scalar_select 0, %s7, %s5
  %v9 = vstv %s3
  %v10 = vunpack.i.l.bf16 %v9
  %v12 = vunpack.i.h.bf16 %v9
  $region1: #{cbr_forward.2} parent=0
    #allocation7 [shape = 'u8[32768]{0}', space=vmem, size = 0x8000, dematerialized = true, scoped, tag = 'FusionAdapter Buffer %fusion.1 = bf16[128,128]{1,0:T(8,128)(2,1)} fusion(%param_2.1, %param_3), kind=kLoop, calls=%fused_computation.2.clone, metadata={op_name="jit(cbr_forward)/jit(_pad)/pad" stack_frame_id=20}']
    // Predicated region
    $region2: #{cbr_forward.2} parent=1 // pred_check
      _
    $region3: #{cbr_forward.2} parent=1 // pred_check_branch
      %15 = sbr.rel (0) target = $region5
    $region4: #{cbr_forward.2} parent=1 // pred_region
      _
    $region5: #{cbr_forward.2} parent=1 // pred_fallthru
      _
    // Predicated region
    $region6: #{cbr_forward.2} parent=1 // pred_check
      _
    $region7: #{cbr_forward.2} parent=1 // pred_check_branch
      %17 = sbr.rel (0) target = $region9
    $region8: #{cbr_forward.2} parent=1 // pred_region
      _
    $region9: #{cbr_forward.2} parent=1 // pred_fallthru
      _
    // Predicated region
    $region10: #{cbr_forward.2} parent=1 // pred_check
      _
    $region11: #{cbr_forward.2} parent=1 // pred_check_branch
      %19 = sbr.rel (0) target = $region13
    $region12: #{cbr_forward.2} parent=1 // pred_region
      _
    $region13: #{cbr_forward.2} parent=1 // pred_fallthru
      _
    %s21 = sor.u32 255, 127
    %s22 = sand.u32 %s21, 85
    %s23 = sshrl.u32 %s22, 1
    %s24 = sor.u32 %s22, %s23
    %s25 = sand.u32 51, %s24
    %s26 = sshrl.u32 %s25, 2
    %s27 = sor.u32 %s25, %s26
    %s28 = sand.u32 15, %s27
    %v29 = vld [vmem:[%s2] sm:%s28]
    %v30 = vunpack.c.l.bf16 %v29
    %v31 = vunpack.c.h.bf16 %v29
    %v32 = vlaneseq
    %v33 = vand.u32 %v32, 127
    %vm35 = vcmp.lt.s32.totalorder %v33, 36
    %v36 = vsel %vm35, %v30, %v10
    %v37 = vpack.c.bf16 0.0, %v36
    %s39 = ssub.s32 16, 1
    %40 = vst [vmem:[#allocation7] sm:%s39] %v37
    %s41 = scalar_lea.vmem %s2, 4
    %s43 = sor.u32 255, 127
    %s44 = sand.u32 %s43, 85
    %s45 = sshrl.u32 %s44, 1
    %s46 = sor.u32 %s44, %s45
    %s47 = sand.u32 51, %s46
    %s48 = sshrl.u32 %s47, 2
    %s49 = sor.u32 %s47, %s48
    %s50 = sand.u32 15, %s49
    %v51 = vld [vmem:[%s41] sm:%s50]
    %v52 = vunpack.c.l.bf16 %v51
    %v53 = vunpack.c.h.bf16 %v51
    %v54 = vlaneseq
    %v55 = vand.u32 %v54, 127
    %vm57 = vcmp.lt.s32.totalorder %v55, 36
    %v58 = vsel %vm57, %v52, %v10
    %s59 = scalar_lea.vmem [#allocation7], 4
    %v60 = vpack.c.bf16 0.0, %v58
    %s62 = ssub.s32 16, 1
    %63 = vst [vmem:[%s59] sm:%s62] %v60
    %s64 = scalar_lea.vmem %s2, 8
    %s66 = sor.u32 255, 127
    %s67 = sand.u32 %s66, 85
    %s68 = sshrl.u32 %s67, 1
    %s69 = sor.u32 %s67, %s68
    %s70 = sand.u32 51, %s69
    %s71 = sshrl.u32 %s70, 2
    %s72 = sor.u32 %s70, %s71
    %s73 = sand.u32 15, %s72
    %v74 = vld [vmem:[%s64] sm:%s73]
    %v75 = vunpack.c.l.bf16 %v74
    %v76 = vunpack.c.h.bf16 %v74
    %v77 = vlaneseq
    %v78 = vand.u32 %v77, 127
    %vm80 = vcmp.lt.s32.totalorder %v78, 36
    %v81 = vsel %vm80, %v75, %v10
    %s82 = scalar_lea.vmem [#allocation7], 8
    %v83 = vpack.c.bf16 0.0, %v81
    %s85 = ssub.s32 16, 1
    %86 = vst [vmem:[%s82] sm:%s85] %v83
    %s87 = scalar_lea.vmem %s2, 12
    %s89 = sor.u32 255, 127
    %s90 = sand.u32 %s89, 85
    %s91 = sshrl.u32 %s90, 1
    %s92 = sor.u32 %s90, %s91
    %s93 = sand.u32 51, %s92
    %s94 = sshrl.u32 %s93, 2
    %s95 = sor.u32 %s93, %s94
    %s96 = sand.u32 15, %s95
    %v97 = vld [vmem:[%s87] sm:%s96]
    %v98 = vunpack.c.l.bf16 %v97
    %v99 = vunpack.c.h.bf16 %v97
    %v100 = vlaneseq
    %v101 = vand.u32 %v100, 127
    %vm103 = vcmp.lt.s32.totalorder %v101, 36
    %v104 = vsel %vm103, %v98, %v10
    %s105 = scalar_lea.vmem [#allocation7], 12
    %v106 = vpack.c.bf16 0.0, %v104
    %s108 = ssub.s32 16, 1
    %109 = vst [vmem:[%s105] sm:%s108] %v106
    %s110 = scalar_lea.vmem %s2, 16
    %s112 = sor.u32 255, 127
    %s113 = sand.u32 %s112, 85
    %s114 = sshrl.u32 %s113, 1
    %s115 = sor.u32 %s113, %s114
    %s116 = sand.u32 51, %s115
    %s117 = sshrl.u32 %s116, 2
    %s118 = sor.u32 %s116, %s117
    %s119 = sand.u32 15, %s118
    %v120 = vld [vmem:[%s110] sm:%s119]
    %v121 = vunpack.c.l.bf16 %v120
    %v122 = vunpack.c.h.bf16 %v120
    %v123 = vlaneseq
    %v124 = vand.u32 %v123, 127
    %vm126 = vcmp.lt.s32.totalorder %v124, 36
    %v127 = vsel %vm126, %v121, %v10
    %s128 = scalar_lea.vmem [#allocation7], 16
    %v129 = vpack.c.bf16 0.0, %v127
    %s131 = ssub.s32 16, 1
    %132 = vst [vmem:[%s128] sm:%s131] %v129
    %s133 = scalar_lea.vmem %s2, 20
    %s135 = sor.u32 255, 127
    %s136 = sand.u32 %s135, 85
    %s137 = sshrl.u32 %s136, 1
    %s138 = sor.u32 %s136, %s137
    %s139 = sand.u32 51, %s138
    %s140 = sshrl.u32 %s139, 2
    %s141 = sor.u32 %s139, %s140
    %s142 = sand.u32 15, %s141
    %v143 = vld [vmem:[%s133] sm:%s142]
    %v144 = vunpack.c.l.bf16 %v143
    %v145 = vunpack.c.h.bf16 %v143
    %v146 = vlaneseq
    %v147 = vand.u32 %v146, 127
    %vm149 = vcmp.lt.s32.totalorder %v147, 36
    %v150 = vsel %vm149, %v144, %v10
    %s151 = scalar_lea.vmem [#allocation7], 20
    %v152 = vpack.c.bf16 0.0, %v150
    %s154 = ssub.s32 16, 1
    %155 = vst [vmem:[%s151] sm:%s154] %v152
    %s156 = scalar_lea.vmem %s2, 24
    %s158 = sor.u32 255, 127
    %s159 = sand.u32 %s158, 85
    %s160 = sshrl.u32 %s159, 1
    %s161 = sor.u32 %s159, %s160
    %s162 = sand.u32 51, %s161
    %s163 = sshrl.u32 %s162, 2
    %s164 = sor.u32 %s162, %s163
    %s165 = sand.u32 15, %s164
    %v166 = vld [vmem:[%s156] sm:%s165]
    %v167 = vunpack.c.l.bf16 %v166
    %v168 = vunpack.c.h.bf16 %v166
    %v169 = vlaneseq
    %v170 = vand.u32 %v169, 127
    %vm172 = vcmp.lt.s32.totalorder %v170, 36
    %v173 = vsel %vm172, %v167, %v10
    %s174 = scalar_lea.vmem [#allocation7], 24
    %v175 = vpack.c.bf16 0.0, %v173
    %s177 = ssub.s32 16, 1
    %178 = vst [vmem:[%s174] sm:%s177] %v175
    %s179 = scalar_lea.vmem %s2, 28
    %s181 = sor.u32 255, 127
    %s182 = sand.u32 %s181, 85
    %s183 = sshrl.u32 %s182, 1
    %s184 = sor.u32 %s182, %s183
    %s185 = sand.u32 51, %s184
    %s186 = sshrl.u32 %s185, 2
    %s187 = sor.u32 %s185, %s186
    %s188 = sand.u32 15, %s187
    %v189 = vld [vmem:[%s179] sm:%s188]
    %v190 = vunpack.c.l.bf16 %v189
    %v191 = vunpack.c.h.bf16 %v189
    %v192 = vlaneseq
    %v193 = vand.u32 %v192, 127
    %vm195 = vcmp.lt.s32.totalorder %v193, 36
    %v196 = vsel %vm195, %v190, %v10
    %s197 = scalar_lea.vmem [#allocation7], 28
    %v198 = vpack.c.bf16 0.0, %v196
    %s200 = ssub.s32 16, 1
    %201 = vst [vmem:[%s197] sm:%s200] %v198
    %s202 = scalar_lea.vmem %s2, 32
    %s204 = sor.u32 255, 127
    %s205 = sand.u32 %s204, 85
    %s206 = sshrl.u32 %s205, 1
    %s207 = sor.u32 %s205, %s206
    %s208 = sand.u32 51, %s207
    %s209 = sshrl.u32 %s208, 2
    %s210 = sor.u32 %s208, %s209
    %s211 = sand.u32 15, %s210
    %v212 = vld [vmem:[%s202] sm:%s211]
    %v213 = vunpack.c.l.bf16 %v212
    %v214 = vunpack.c.h.bf16 %v212
    %v215 = vlaneseq
    %v216 = vand.u32 %v215, 127
    %vm218 = vcmp.lt.s32.totalorder %v216, 36
    %v219 = vsel %vm218, %v213, %v10
    %s220 = scalar_lea.vmem [#allocation7], 32
    %v221 = vpack.c.bf16 0.0, %v219
    %s223 = ssub.s32 16, 1
    %224 = vst [vmem:[%s220] sm:%s223] %v221
    %s225 = scalar_lea.vmem %s2, 36
    %s227 = sor.u32 255, 127
    %s228 = sand.u32 %s227, 85
    %s229 = sshrl.u32 %s228, 1
    %s230 = sor.u32 %s228, %s229
    %s231 = sand.u32 51, %s230
    %s232 = sshrl.u32 %s231, 2
    %s233 = sor.u32 %s231, %s232
    %s234 = sand.u32 15, %s233
    %v235 = vld [vmem:[%s225] sm:%s234]
    %v236 = vunpack.c.l.bf16 %v235
    %v237 = vunpack.c.h.bf16 %v235
    %v238 = vlaneseq
    %v239 = vand.u32 %v238, 127
    %vm241 = vcmp.lt.s32.totalorder %v239, 36
    %v242 = vsel %vm241, %v236, %v10
    %s243 = scalar_lea.vmem [#allocation7], 36
    %v244 = vpack.c.bf16 0.0, %v242
    %s246 = ssub.s32 16, 1
    %247 = vst [vmem:[%s243] sm:%s246] %v244
    %s248 = scalar_lea.vmem %s2, 40
    %s250 = sor.u32 255, 127
    %s251 = sand.u32 %s250, 85
    %s252 = sshrl.u32 %s251, 1
    %s253 = sor.u32 %s251, %s252
    %s254 = sand.u32 51, %s253
    %s255 = sshrl.u32 %s254, 2
    %s256 = sor.u32 %s254, %s255
    %s257 = sand.u32 15, %s256
    %v258 = vld [vmem:[%s248] sm:%s257]
    %v259 = vunpack.c.l.bf16 %v258
    %v260 = vunpack.c.h.bf16 %v258
    %v261 = vlaneseq
    %v262 = vand.u32 %v261, 127
    %vm264 = vcmp.lt.s32.totalorder %v262, 36
    %v265 = vsel %vm264, %v259, %v10
    %s266 = scalar_lea.vmem [#allocation7], 40
    %v267 = vpack.c.bf16 0.0, %v265
    %s269 = ssub.s32 16, 1
    %270 = vst [vmem:[%s266] sm:%s269] %v267
    %s271 = scalar_lea.vmem %s2, 44
    %s273 = sor.u32 255, 127
    %s274 = sand.u32 %s273, 85
    %s275 = sshrl.u32 %s274, 1
    %s276 = sor.u32 %s274, %s275
    %s277 = sand.u32 51, %s276
    %s278 = sshrl.u32 %s277, 2
    %s279 = sor.u32 %s277, %s278
    %s280 = sand.u32 15, %s279
    %v281 = vld [vmem:[%s271] sm:%s280]
    %v282 = vunpack.c.l.bf16 %v281
    %v283 = vunpack.c.h.bf16 %v281
    %v284 = vlaneseq
    %v285 = vand.u32 %v284, 127
    %vm287 = vcmp.lt.s32.totalorder %v285, 36
    %v288 = vsel %vm287, %v282, %v10
    %s289 = scalar_lea.vmem [#allocation7], 44
    %v290 = vpack.c.bf16 0.0, %v288
    %s292 = ssub.s32 16, 1
    %293 = vst [vmem:[%s289] sm:%s292] %v290
    %s294 = scalar_lea.vmem %s2, 48
    %s296 = sor.u32 255, 127
    %s297 = sand.u32 %s296, 85
    %s298 = sshrl.u32 %s297, 1
    %s299 = sor.u32 %s297, %s298
    %s300 = sand.u32 51, %s299
    %s301 = sshrl.u32 %s300, 2
    %s302 = sor.u32 %s300, %s301
    %s303 = sand.u32 15, %s302
    %v304 = vld [vmem:[%s294] sm:%s303]
    %v305 = vunpack.c.l.bf16 %v304
    %v306 = vunpack.c.h.bf16 %v304
    %v307 = vlaneseq
    %v308 = vand.u32 %v307, 127
    %vm310 = vcmp.lt.s32.totalorder %v308, 36
    %v311 = vsel %vm310, %v305, %v10
    %s312 = scalar_lea.vmem [#allocation7], 48
    %v313 = vpack.c.bf16 0.0, %v311
    %s315 = ssub.s32 16, 1
    %316 = vst [vmem:[%s312] sm:%s315] %v313
    %s317 = scalar_lea.vmem %s2, 52
    %s319 = sor.u32 255, 127
    %s320 = sand.u32 %s319, 85
    %s321 = sshrl.u32 %s320, 1
    %s322 = sor.u32 %s320, %s321
    %s323 = sand.u32 51, %s322
    %s324 = sshrl.u32 %s323, 2
    %s325 = sor.u32 %s323, %s324
    %s326 = sand.u32 15, %s325
    %v327 = vld [vmem:[%s317] sm:%s326]
    %v328 = vunpack.c.l.bf16 %v327
    %v329 = vunpack.c.h.bf16 %v327
    %v330 = vlaneseq
    %v331 = vand.u32 %v330, 127
    %vm333 = vcmp.lt.s32.totalorder %v331, 36
    %v334 = vsel %vm333, %v328, %v10
    %s335 = scalar_lea.vmem [#allocation7], 52
    %v336 = vpack.c.bf16 0.0, %v334
    %s338 = ssub.s32 16, 1
    %339 = vst [vmem:[%s335] sm:%s338] %v336
    %s340 = scalar_lea.vmem %s2, 56
    %s342 = sor.u32 255, 127
    %s343 = sand.u32 %s342, 85
    %s344 = sshrl.u32 %s343, 1
    %s345 = sor.u32 %s343, %s344
    %s346 = sand.u32 51, %s345
    %s347 = sshrl.u32 %s346, 2
    %s348 = sor.u32 %s346, %s347
    %s349 = sand.u32 15, %s348
    %v350 = vld [vmem:[%s340] sm:%s349]
    %v351 = vunpack.c.l.bf16 %v350
    %v352 = vunpack.c.h.bf16 %v350
    %v353 = vlaneseq
    %v354 = vand.u32 %v353, 127
    %vm356 = vcmp.lt.s32.totalorder %v354, 36
    %v357 = vsel %vm356, %v351, %v10
    %s358 = scalar_lea.vmem [#allocation7], 56
    %v359 = vpack.c.bf16 0.0, %v357
    %s361 = ssub.s32 16, 1
    %362 = vst [vmem:[%s358] sm:%s361] %v359
    %s363 = scalar_lea.vmem %s2, 60
    %s365 = sor.u32 255, 127
    %s366 = sand.u32 %s365, 85
    %s367 = sshrl.u32 %s366, 1
    %s368 = sor.u32 %s366, %s367
    %s369 = sand.u32 51, %s368
    %s370 = sshrl.u32 %s369, 2
    %s371 = sor.u32 %s369, %s370
    %s372 = sand.u32 15, %s371
    %v373 = vld [vmem:[%s363] sm:%s372]
    %v374 = vunpack.c.l.bf16 %v373
    %v375 = vunpack.c.h.bf16 %v373
    %v376 = vlaneseq
    %v377 = vand.u32 %v376, 127
    %vm379 = vcmp.lt.s32.totalorder %v377, 36
    %v380 = vsel %vm379, %v374, %v10
    %s381 = scalar_lea.vmem [#allocation7], 60
    %v382 = vpack.c.bf16 0.0, %v380
    %s384 = ssub.s32 16, 1
    %385 = vst [vmem:[%s381] sm:%s384] %v382
    %v386 = vld [vmem:[#allocation7] sm:$0xf]
    %v387 = vld [vmem:[#allocation7 + $0x4] sm:$0xf]
    %v388 = vld [vmem:[#allocation7 + $0x8] sm:$0xf]
    %v389 = vld [vmem:[#allocation7 + $0xc] sm:$0xf]
    %v390 = vld [vmem:[#allocation7 + $0x10] sm:$0xf]
    %v391 = vld [vmem:[#allocation7 + $0x14] sm:$0xf]
    %v392 = vld [vmem:[#allocation7 + $0x18] sm:$0xf]
    %v393 = vld [vmem:[#allocation7 + $0x1c] sm:$0xf]
    %v394 = vld [vmem:[#allocation7 + $0x20] sm:$0xf]
    %v395 = vld [vmem:[#allocation7 + $0x24] sm:$0xf]
    %v396 = vld [vmem:[#allocation7 + $0x28] sm:$0xf]
    %v397 = vld [vmem:[#allocation7 + $0x2c] sm:$0xf]
    %v398 = vld [vmem:[#allocation7 + $0x30] sm:$0xf]
    %v399 = vld [vmem:[#allocation7 + $0x34] sm:$0xf]
    %v400 = vld [vmem:[#allocation7 + $0x38] sm:$0xf]
    %v401 = vld [vmem:[#allocation7 + $0x3c] sm:$0xf]
    %v402 = vld [vmem:[%s0] sm:$0xf]
    %v403 = vld [vmem:[%s0 + $0x4] sm:$0xf]
    %v404 = vld [vmem:[%s0 + $0x8] sm:$0xf]
    %v405 = vld [vmem:[%s0 + $0xc] sm:$0xf]
    %v406 = vld [vmem:[%s0 + $0x10] sm:$0xf]
    %v407 = vld [vmem:[%s0 + $0x14] sm:$0xf]
    %v408 = vld [vmem:[%s0 + $0x18] sm:$0xf]
    %v409 = vld [vmem:[%s0 + $0x1c] sm:$0xf]
    %v410 = vld [vmem:[%s0 + $0x20] sm:$0xf]
    %v411 = vld [vmem:[%s0 + $0x24] sm:$0xf]
    %v412 = vld [vmem:[%s0 + $0x28] sm:$0xf]
    %v413 = vld [vmem:[%s0 + $0x2c] sm:$0xf]
    %v414 = vld [vmem:[%s0 + $0x30] sm:$0xf]
    %v415 = vld [vmem:[%s0 + $0x34] sm:$0xf]
    %v416 = vld [vmem:[%s0 + $0x38] sm:$0xf]
    %v417 = vld [vmem:[%s0 + $0x3c] sm:$0xf]
    %v418 = vld [vmem:[%s1] sm:$0x1]
    %v420 = vperm.slane %v418, 0
    %v438 = vunpack.c.l.b16 %v386
    %v439 = vunpack.c.l.b16 %v387
    %v440 = vunpack.c.l.b16 %v388
    %v441 = vunpack.c.l.b16 %v389
    %v442 = vunpack.c.l.b16 %v390
    %v443 = vunpack.c.l.b16 %v391
    %v444 = vunpack.c.l.b16 %v392
    %v445 = vunpack.c.l.b16 %v393
    %v446 = vunpack.c.l.b16 %v394
    %v447 = vunpack.c.l.b16 %v395
    %v448 = vunpack.c.l.b16 %v396
    %v449 = vunpack.c.l.b16 %v397
    %v450 = vunpack.c.l.b16 %v398
    %v451 = vunpack.c.l.b16 %v399
    %v452 = vunpack.c.l.b16 %v400
    %v453 = vunpack.c.l.b16 %v401
    %v454 = vpack.c.b16 %v439, %v438
    %v455 = vpack.c.b16 %v441, %v440
    %v456 = vpack.c.b16 %v443, %v442
    %v457 = vpack.c.b16 %v445, %v444
    %v458 = vpack.c.b16 %v447, %v446
    %v459 = vpack.c.b16 %v449, %v448
    %v460 = vpack.c.b16 %v451, %v450
    %v461 = vpack.c.b16 %v453, %v452
    %v486 = vunpack.c.l.b16 %v402
    %v487 = vunpack.c.l.b16 %v403
    %v488 = vunpack.c.l.b16 %v404
    %v489 = vunpack.c.l.b16 %v405
    %v490 = vunpack.c.l.b16 %v406
    %v491 = vunpack.c.l.b16 %v407
    %v492 = vunpack.c.l.b16 %v408
    %v493 = vunpack.c.l.b16 %v409
    %v494 = vunpack.c.l.b16 %v410
    %v495 = vunpack.c.l.b16 %v411
    %v496 = vunpack.c.l.b16 %v412
    %v497 = vunpack.c.l.b16 %v413
    %v498 = vunpack.c.l.b16 %v414
    %v499 = vunpack.c.l.b16 %v415
    %v500 = vunpack.c.l.b16 %v416
    %v501 = vunpack.c.l.b16 %v417
    %v502 = vpack.c.b16 %v487, %v486
    %v503 = vpack.c.b16 %v489, %v488
    %v504 = vpack.c.b16 %v491, %v490
    %v505 = vpack.c.b16 %v493, %v492
    %v506 = vpack.c.b16 %v495, %v494
    %v507 = vpack.c.b16 %v497, %v496
    %v508 = vpack.c.b16 %v499, %v498
    %v509 = vpack.c.b16 %v501, %v500
    %518 = vmatpush.bf16.msra.mxu0 %v509
    %519 = vmatpush.bf16.msra.mxu0 %v508
    %520 = vmatpush.bf16.msra.mxu0 %v507
    %521 = vmatpush.bf16.msra.mxu0 %v506
    %522 = vmatpush.bf16.msra.mxu0 %v505
    %523 = vmatpush.bf16.msra.mxu0 %v504
    %524 = vmatpush.bf16.msra.mxu0 %v503
    %525 = vmatpush.bf16.msra.mxu0 %v502
    %526 = vmatmul.bf16.gmra.mxu0 %v454
    %v527 = vpop.f32.mrf.mxu0
    %v528 = vadd.f32 %v420, %v527
    %v529 = vpop.f32.mrf.mxu0
    %v530 = vadd.f32 %v420, %v529
    %531 = vmatmul.bf16.gmra.mxu0 %v455
    %v532 = vpop.f32.mrf.mxu0
    %v533 = vadd.f32 %v420, %v532
    %v534 = vpop.f32.mrf.mxu0
    %v535 = vadd.f32 %v420, %v534
    %536 = vmatmul.bf16.gmra.mxu0 %v456
    %v537 = vpop.f32.mrf.mxu0
    %v538 = vadd.f32 %v420, %v537
    %v539 = vpop.f32.mrf.mxu0
    %v540 = vadd.f32 %v420, %v539
    %541 = vmatmul.bf16.gmra.mxu0 %v457
    %v542 = vpop.f32.mrf.mxu0
    %v543 = vadd.f32 %v420, %v542
    %v544 = vpop.f32.mrf.mxu0
    %v545 = vadd.f32 %v420, %v544
    %546 = vmatmul.bf16.gmra.mxu0 %v458
    %v547 = vpop.f32.mrf.mxu0
    %v548 = vadd.f32 %v420, %v547
    %v549 = vpop.f32.mrf.mxu0
    %v550 = vadd.f32 %v420, %v549
    %551 = vmatmul.bf16.gmra.mxu0 %v459
    %v552 = vpop.f32.mrf.mxu0
    %v553 = vadd.f32 %v420, %v552
    %v554 = vpop.f32.mrf.mxu0
    %v555 = vadd.f32 %v420, %v554
    %556 = vmatmul.bf16.gmra.mxu0 %v460
    %v557 = vpop.f32.mrf.mxu0
    %v558 = vadd.f32 %v420, %v557
    %v559 = vpop.f32.mrf.mxu0
    %v560 = vadd.f32 %v420, %v559
    %561 = vmatmul.bf16.gmra.mxu0 %v461
    %v562 = vpop.f32.mrf.mxu0
    %v563 = vadd.f32 %v420, %v562
    %v564 = vpop.f32.mrf.mxu0
    %v565 = vadd.f32 %v420, %v564
    %566 = vdwg.mxu0
    %v567 = vmax.f32 %v528, 0.0
    %v568 = vmax.f32 %v530, 0.0
    %v569 = vmax.f32 %v533, 0.0
    %v570 = vmax.f32 %v535, 0.0
    %v571 = vmax.f32 %v538, 0.0
    %v572 = vmax.f32 %v540, 0.0
    %v573 = vmax.f32 %v543, 0.0
    %v574 = vmax.f32 %v545, 0.0
    %v575 = vmax.f32 %v548, 0.0
    %v576 = vmax.f32 %v550, 0.0
    %v577 = vmax.f32 %v553, 0.0
    %v578 = vmax.f32 %v555, 0.0
    %v579 = vmax.f32 %v558, 0.0
    %v580 = vmax.f32 %v560, 0.0
    %v581 = vmax.f32 %v563, 0.0
    %v582 = vmax.f32 %v565, 0.0
    %583 = vst [vmem:[%s4] sm:$0xff] %v567
    %584 = vst [vmem:[%s4 + $0x8] sm:$0xff] %v568
    %585 = vst [vmem:[%s4 + $0x10] sm:$0xff] %v569
    %586 = vst [vmem:[%s4 + $0x18] sm:$0xff] %v570
    %587 = vst [vmem:[%s4 + $0x20] sm:$0xff] %v571
    %588 = vst [vmem:[%s4 + $0x28] sm:$0xff] %v572
    %589 = vst [vmem:[%s4 + $0x30] sm:$0xff] %v573
    %590 = vst [vmem:[%s4 + $0x38] sm:$0xff] %v574
    %591 = vst [vmem:[%s4 + $0x40] sm:$0xff] %v575
    %592 = vst [vmem:[%s4 + $0x48] sm:$0xff] %v576
    %593 = vst [vmem:[%s4 + $0x50] sm:$0xff] %v577
    %594 = vst [vmem:[%s4 + $0x58] sm:$0xff] %v578
    %595 = vst [vmem:[%s4 + $0x60] sm:$0xff] %v579
    %596 = vst [vmem:[%s4 + $0x68] sm:$0xff] %v580
    %597 = vst [vmem:[%s4 + $0x70] sm:$0xff] %v581
    %598 = vst [vmem:[%s4 + $0x78] sm:$0xff] %v582
    // Predicated region
    $region14: #{cbr_forward.2} parent=1 // pred_check
      _
    $region15: #{cbr_forward.2} parent=1 // pred_check_branch
      %600 = sbr.rel (0) target = $region17
    $region16: #{cbr_forward.2} parent=1 // pred_region
      _
    $region17: #{cbr_forward.2} parent=1 // pred_fallthru
      _
    // Predicated region
    $region18: #{cbr_forward.2} parent=1 // pred_check
      _
    $region19: #{cbr_forward.2} parent=1 // pred_check_branch
      %602 = sbr.rel (0) target = $region21
    $region20: #{cbr_forward.2} parent=1 // pred_region
      _
    $region21: #{cbr_forward.2} parent=1 // pred_fallthru
      _

</llo_original>
